<compile_context>
chip_gen: v5e
topology: v5e:2x2
jax: 0.10.0
libtpu: 0.0.40
codegen_flags: <defaults>
</compile_context>

<pallas_src>
import functools

import jax
import jax.numpy as jnp
import numpy as np
from jax.experimental import pallas as pl
from jax.experimental.pallas import tpu as pltpu


# ============================================================================
# Kernel A: fused (q + kv) 1x1 conv  +  3x3 depthwise conv
# ============================================================================
def _qkv_kernel(x_ref, w1_ref, wdw_ref, cmask_ref, qkv_ref, pad_ref, *, H, W, lpad):
    HW = H * W
    C3 = qkv_ref.shape[1]

    # ---- fused 1x1 convolution on the MXU: (C3, Cin2) @ (Cin2, HW) ----------
    x = x_ref[0].astype(jnp.float32)                          # (Cin2, HW)
    w1 = w1_ref[...].astype(jnp.float32)                      # (C3, Cin2)
    y1 = jnp.dot(w1, x, preferred_element_type=jnp.float32)   # (C3, HW)

    # ---- depthwise 3x3: flat zero-padded buffer in VMEM (no HBM pad) --------
    pad_ref[:, 0:lpad] = jnp.zeros((C3, lpad), jnp.float32)
    pad_ref[:, lpad + HW:] = jnp.zeros((C3, W + 1), jnp.float32)
    pad_ref[:, lpad:lpad + HW] = y1

    wdw = wdw_ref[...].astype(jnp.float32)                    # (C3, 9), tap = (dy+1)*3+(dx+1)
    mask_l = cmask_ref[0:1, :]                                # (1, HW): valid when x >= 1
    mask_r = cmask_ref[1:2, :]                                # (1, HW): valid when x <= W-2

    acc = jnp.zeros((C3, HW), jnp.float32)
    for dy in (-1, 0, 1):
        for dx in (-1, 0, 1):
            t = (dy + 1) * 3 + (dx + 1)
            start = lpad + dy * W + dx
            win = pad_ref[:, start:start + HW]                # row OOB -> zeros from padding
            contrib = win * wdw[:, t:t + 1]                   # per-channel tap weight
            if dx == -1:
                contrib = contrib * mask_l                    # kill horizontal wrap-around
            elif dx == 1:
                contrib = contrib * mask_r
            acc = acc + contrib
    qkv_ref[0] = acc.astype(qkv_ref.dtype)


# ============================================================================
# Kernel B: L2-normalized channel attention (all heads) + project_out + residual
# ============================================================================
def _attn_kernel(temp_ref, qkv_ref, xq_ref, wp_ref, o_ref, *, dim, num_heads):
    ch = dim // num_heads
    # residual (q_in) initialises the accumulator; per-head projected outputs
    # are added on top:  out = q_in + sum_h Wp[:, h*ch:(h+1)*ch] @ (attn_h @ v_h)
    acc = xq_ref[0].astype(jnp.float32)                       # (dim, HW)

    for h in range(num_heads):
        q = qkv_ref[0, h * ch:(h + 1) * ch, :].astype(jnp.float32)                 # (ch, HW)
        k = qkv_ref[0, dim + h * ch:dim + (h + 1) * ch, :].astype(jnp.float32)
        v = qkv_ref[0, 2 * dim + h * ch:2 * dim + (h + 1) * ch, :].astype(jnp.float32)

        # torch.nn.functional.normalize(dim=-1): x / max(||x||, 1e-12), via EUP rsqrt
        qn = q * jax.lax.rsqrt(jnp.maximum(jnp.sum(q * q, axis=-1, keepdims=True), 1e-24))
        kn = k * jax.lax.rsqrt(jnp.maximum(jnp.sum(k * k, axis=-1, keepdims=True), 1e-24))

        attn = jnp.dot(qn, kn.T, preferred_element_type=jnp.float32)               # (ch, ch)
        attn = attn * temp_ref[h]
        attn = attn - jnp.max(attn, axis=-1, keepdims=True)
        e = jnp.exp(attn)
        p = e * pl.reciprocal(jnp.sum(e, axis=-1, keepdims=True), approx=True)

        oh = jnp.dot(p, v, preferred_element_type=jnp.float32)                     # (ch, HW)
        wp_h = wp_ref[:, h * ch:(h + 1) * ch].astype(jnp.float32)                  # (dim, ch)
        acc = acc + jnp.dot(wp_h, oh, preferred_element_type=jnp.float32)

    o_ref[0] = acc.astype(o_ref.dtype)


# ============================================================================
# Full forward pass (mirrors Attention.forward), NCHW in / NCHW out
# ============================================================================
def attention_forward(x_nchw, params, num_heads):
    b, c2, H, W = x_nchw.shape
    dim = c2 // 2
    HW = H * W
    C3 = 3 * dim
    lpad = ((W + 1 + 127) // 128) * 128           # 128-aligned left pad of the flat buffer

    x2 = x_nchw.reshape(b, c2, HW)                # contiguous reshape: free (no transpose)

    # block-diagonal combined 1x1 weight: rows [0:dim] act on q_in, rows [dim:] on kv_in
    w1 = jnp.zeros((C3, c2), x_nchw.dtype)
    w1 = w1.at[:dim, :dim].set(params["q_w"])
    w1 = w1.at[dim:, dim:].set(params["kv_w"])
    wdw = jnp.concatenate([params["q_dw"], params["kv_dw"]], axis=0)               # (C3, 9)

    # static column-validity masks for the +-1 horizontal taps
    col = np.arange(HW, dtype=np.int64) % W
    cmask = jnp.asarray(np.stack([(col >= 1), (col <= W - 2)]).astype(np.float32))  # (2, HW)

    qkv = pl.pallas_call(
        functools.partial(_qkv_kernel, H=H, W=W, lpad=lpad),
        out_shape=jax.ShapeDtypeStruct((b, C3, HW), x_nchw.dtype),
        grid=(b,),
        in_specs=[
            pl.BlockSpec((1, c2, HW), lambda i: (i, 0, 0)),     # x (both halves)
            pl.BlockSpec((C3, c2), lambda i: (0, 0)),           # combined 1x1 weight
            pl.BlockSpec((C3, 9), lambda i: (0, 0)),            # depthwise taps
            pl.BlockSpec((2, HW), lambda i: (0, 0)),            # column masks
        ],
        out_specs=pl.BlockSpec((1, C3, HW), lambda i: (i, 0, 0)),
        scratch_shapes=[pltpu.VMEM((C3, lpad + HW + W + 1), jnp.float32)],
        compiler_params=pltpu.CompilerParams(dimension_semantics=("parallel",)),
    )(x2, w1, wdw, cmask)

    out2 = pl.pallas_call(
        functools.partial(_attn_kernel, dim=dim, num_heads=num_heads),
        out_shape=jax.ShapeDtypeStruct((b, dim, HW), x_nchw.dtype),
        grid=(b,),
        in_specs=[
            pl.BlockSpec(memory_space=pltpu.MemorySpace.SMEM),  # temperature (num_heads,)
            pl.BlockSpec((1, C3, HW), lambda i: (i, 0, 0)),     # q | k | v
            pl.BlockSpec((1, dim, HW), lambda i: (i, 0, 0)),    # q_in half of x (residual)
            pl.BlockSpec((dim, dim), lambda i: (0, 0)),         # project_out weight
        ],
        out_specs=pl.BlockSpec((1, dim, HW), lambda i: (i, 0, 0)),
        compiler_params=pltpu.CompilerParams(dimension_semantics=("parallel",)),
    )(params["temperature"], qkv, x2, params["po_w"])

    return out2.reshape(b, dim, H, W)


# ============================================================================
# Pure-JAX reference for correctness checking
# ============================================================================
def reference_forward(x_nchw, params, num_heads):
    b, c2, H, W = x_nchw.shape
    dim = c2 // 2
    q_in, kv_in = x_nchw[:, :dim], x_nchw[:, dim:]

    def pw(x, w):                       # w: (Cout, Cin)
        return jnp.einsum("oc,bchw->bohw", w, x)

    def dw(x, taps):                    # taps: (C, 9), tap index = ky*3+kx
        C = x.shape[1]
        w = taps.reshape(C, 3, 3)
        rhs = jnp.transpose(w[:, None], (2, 3, 1, 0))          # HWIO (3,3,1,C)
        xn = jnp.transpose(x, (0, 2, 3, 1))
        out = jax.lax.conv_general_dilated(
            xn, rhs, (1, 1), "SAME",
            dimension_numbers=("NHWC", "HWIO", "NHWC"),
            feature_group_count=C)
        return jnp.transpose(out, (0, 3, 1, 2))

    q = dw(pw(q_in, params["q_w"]), params["q_dw"])
    kv = dw(pw(kv_in, params["kv_w"]), params["kv_dw"])
    k, v = kv[:, :dim], kv[:, dim:]

    c_head = dim // num_heads
    heads = lambda t: t.reshape(b, num_heads, c_head, H * W)
    qh, kh, vh = heads(q), heads(k), heads(v)

    l2n = lambda t: t / jnp.maximum(jnp.linalg.norm(t, axis=-1, keepdims=True), 1e-12)
    qh, kh = l2n(qh), l2n(kh)

    attn = jnp.einsum("bhcn,bhdn->bhcd", qh, kh)
    attn = attn * params["temperature"][None, :, None, None]
    attn = jax.nn.softmax(attn, axis=-1)
    oh = jnp.einsum("bhcd,bhdn->bhcn", attn, vh)

    out = oh.reshape(b, dim, H, W)
    return pw(out, params["po_w"]) + q_in


if __name__ == "__main__":
    b, dim, H, W, num_heads = 2, 16, 8, 8, 2
    key = jax.random.PRNGKey(0)
    keys = jax.random.split(key, 6)
    scale = 0.2
    params = {
        # 1x1 conv weights stored as (Cout, Cin)
        "q_w": scale * jax.random.normal(keys[0], (dim, dim), jnp.float32),
        "kv_w": scale * jax.random.normal(keys[1], (2 * dim, dim), jnp.float32),
        "po_w": scale * jax.random.normal(keys[2], (dim, dim), jnp.float32),
        # depthwise 3x3 weights stored as (C, 9) taps, tap index = ky*3+kx
        "q_dw": scale * jax.random.normal(keys[3], (dim, 9), jnp.float32),
        "kv_dw": scale * jax.random.normal(keys[4], (2 * dim, 9), jnp.float32),
        # nn.Parameter(torch.ones(num_heads, 1, 1)) -> flat (num_heads,)
        "temperature": jnp.ones((num_heads,), jnp.float32),
    }

    x = jax.random.normal(keys[5], (b, 2 * dim, H, W), jnp.float32)

    out = attention_forward(x, params, num_heads)
    out = jax.block_until_ready(out)

    ref = reference_forward(x, params, num_heads)
    assert out.shape == (b, dim, H, W)
    # tolerance slightly relaxed vs f64 because of pl.reciprocal(approx=True)
    np.testing.assert_allclose(np.asarray(out), np.asarray(ref),
                               atol=2e-3, rtol=2e-3)
    print("KERNEL_OK")
</pallas_src>

<mosaic_0001>
module attributes {stable_mosaic.version = 11 : i64} {
  func.func @_qkv_kernel(%arg0: i32, %arg1: memref<1x32x64xf32, #tpu.memory_space<vmem>>, %arg2: memref<48x32xf32, #tpu.memory_space<vmem>>, %arg3: memref<48x9xf32, #tpu.memory_space<vmem>>, %arg4: memref<2x64xf32, #tpu.memory_space<vmem>>, %arg5: memref<1x48x64xf32, #tpu.memory_space<vmem>>, %arg6: memref<48x201xf32, #tpu.memory_space<vmem>>) attributes {dimension_semantics = [#tpu.dimension_semantics<parallel>], iteration_bounds = array<i64: 2>, scalar_prefetch = 0 : i64, scratch_operands = 1 : i64, tpu.core_type = #tpu.core_type<tc>, window_params = [{transform_indices = @transform_0, window_bounds = array<i64: 1, 32, 64>}, {pipeline_mode = #tpu.pipeline_mode<synchronous>, transform_indices = @transform_1, window_bounds = array<i64: 48, 32>}, {pipeline_mode = #tpu.pipeline_mode<synchronous>, transform_indices = @transform_2, window_bounds = array<i64: 48, 9>}, {pipeline_mode = #tpu.pipeline_mode<synchronous>, transform_indices = @transform_3, window_bounds = array<i64: 2, 64>}, {transform_indices = @transform_4, window_bounds = array<i64: 1, 48, 64>}]} {
    %c0 = arith.constant 0 : index
    %c0_0 = arith.constant 0 : index
    %c0_1 = arith.constant 0 : index
    %0 = vector.load %arg1[%c0, %c0_0, %c0_1] : memref<1x32x64xf32, #tpu.memory_space<vmem>>, vector<1x32x64xf32>
    %1 = vector.shape_cast %0 : vector<1x32x64xf32> to vector<32x64xf32>
    %c0_2 = arith.constant 0 : index
    %c0_3 = arith.constant 0 : index
    %2 = vector.load %arg2[%c0_2, %c0_3] : memref<48x32xf32, #tpu.memory_space<vmem>>, vector<48x32xf32>
    %cst = arith.constant dense<0.000000e+00> : vector<48x64xf32>
    %3 = tpu.matmul %2, %1, %cst {dimension_numbers = #tpu.dot_dimension_numbers<[1], [0], [0], [1], [0, 0, 1, 1], [], []>} : vector<48x32xf32>, vector<32x64xf32>, vector<48x64xf32> -> vector<48x64xf32>
    %cst_4 = arith.constant 0.000000e+00 : f32
    %4 = vector.broadcast %cst_4 : f32 to vector<48x128xf32>
    %c0_5 = arith.constant 0 : index
    %c0_6 = arith.constant 0 : index
    %5 = vector.load %arg6[%c0_5, %c0_6] : memref<48x201xf32, #tpu.memory_space<vmem>>, vector<48x128xf32>
    tpu.vector_store %arg6[%c0_5, %c0_6], %4 {strides = array<i32>} : memref<48x201xf32, #tpu.memory_space<vmem>>, vector<48x128xf32>,
    %cst_7 = arith.constant 0.000000e+00 : f32
    %6 = vector.broadcast %cst_7 : f32 to vector<48x9xf32>
    %c0_8 = arith.constant 0 : index
    %c192 = arith.constant 192 : index
    %7 = vector.load %arg6[%c0_8, %c192] : memref<48x201xf32, #tpu.memory_space<vmem>>, vector<48x9xf32>
    tpu.vector_store %arg6[%c0_8, %c192], %6 {strides = array<i32>} : memref<48x201xf32, #tpu.memory_space<vmem>>, vector<48x9xf32>,
    %c0_9 = arith.constant 0 : index
    %c128 = arith.constant 128 : index
    %8 = vector.load %arg6[%c0_9, %c128] : memref<48x201xf32, #tpu.memory_space<vmem>>, vector<48x64xf32>
    tpu.vector_store %arg6[%c0_9, %c128], %3 {strides = array<i32>} : memref<48x201xf32, #tpu.memory_space<vmem>>, vector<48x64xf32>,
    %c0_10 = arith.constant 0 : index
    %c0_11 = arith.constant 0 : index
    %9 = vector.load %arg3[%c0_10, %c0_11] : memref<48x9xf32, #tpu.memory_space<vmem>>, vector<48x9xf32>
    %c0_12 = arith.constant 0 : index
    %c0_13 = arith.constant 0 : index
    %10 = vector.load %arg4[%c0_12, %c0_13] : memref<2x64xf32, #tpu.memory_space<vmem>>, vector<1x64xf32>
    %c1 = arith.constant 1 : index
    %c0_14 = arith.constant 0 : index
    %11 = vector.load %arg4[%c1, %c0_14] : memref<2x64xf32, #tpu.memory_space<vmem>>, vector<1x64xf32>
    %cst_15 = arith.constant 0.000000e+00 : f32
    %12 = vector.broadcast %cst_15 : f32 to vector<48x64xf32>
    %c0_16 = arith.constant 0 : index
    %c119 = arith.constant 119 : index
    %13 = vector.load %arg6[%c0_16, %c119] : memref<48x201xf32, #tpu.memory_space<vmem>>, vector<48x64xf32>
    %14 = vector.extract_strided_slice %9 {offsets = [0, 0], sizes = [48, 1], strides = [1, 1]} : vector<48x9xf32> to vector<48x1xf32>
    %15 = vector.broadcast %14 : vector<48x1xf32> to vector<48x64xf32>
    %16 = arith.mulf %13, %15 : vector<48x64xf32>
    %17 = vector.broadcast %10 : vector<1x64xf32> to vector<48x64xf32>
    %18 = arith.mulf %16, %17 : vector<48x64xf32>
    %19 = arith.addf %12, %18 : vector<48x64xf32>
    %c0_17 = arith.constant 0 : index
    %c120 = arith.constant 120 : index
    %20 = vector.load %arg6[%c0_17, %c120] : memref<48x201xf32, #tpu.memory_space<vmem>>, vector<48x64xf32>
    %21 = vector.extract_strided_slice %9 {offsets = [0, 1], sizes = [48, 1], strides = [1, 1]} : vector<48x9xf32> to vector<48x1xf32>
    %22 = vector.broadcast %21 : vector<48x1xf32> to vector<48x64xf32>
    %23 = arith.mulf %20, %22 : vector<48x64xf32>
    %24 = arith.addf %19, %23 : vector<48x64xf32>
    %c0_18 = arith.constant 0 : index
    %c121 = arith.constant 121 : index
    %25 = vector.load %arg6[%c0_18, %c121] : memref<48x201xf32, #tpu.memory_space<vmem>>, vector<48x64xf32>
    %26 = vector.extract_strided_slice %9 {offsets = [0, 2], sizes = [48, 1], strides = [1, 1]} : vector<48x9xf32> to vector<48x1xf32>
    %27 = vector.broadcast %26 : vector<48x1xf32> to vector<48x64xf32>
    %28 = arith.mulf %25, %27 : vector<48x64xf32>
    %29 = vector.broadcast %11 : vector<1x64xf32> to vector<48x64xf32>
    %30 = arith.mulf %28, %29 : vector<48x64xf32>
    %31 = arith.addf %24, %30 : vector<48x64xf32>
    %c0_19 = arith.constant 0 : index
    %c127 = arith.constant 127 : index
    %32 = vector.load %arg6[%c0_19, %c127] : memref<48x201xf32, #tpu.memory_space<vmem>>, vector<48x64xf32>
    %33 = vector.extract_strided_slice %9 {offsets = [0, 3], sizes = [48, 1], strides = [1, 1]} : vector<48x9xf32> to vector<48x1xf32>
    %34 = vector.broadcast %33 : vector<48x1xf32> to vector<48x64xf32>
    %35 = arith.mulf %32, %34 : vector<48x64xf32>
    %36 = vector.broadcast %10 : vector<1x64xf32> to vector<48x64xf32>
    %37 = arith.mulf %35, %36 : vector<48x64xf32>
    %38 = arith.addf %31, %37 : vector<48x64xf32>
    %c0_20 = arith.constant 0 : index
    %c128_21 = arith.constant 128 : index
    %39 = vector.load %arg6[%c0_20, %c128_21] : memref<48x201xf32, #tpu.memory_space<vmem>>, vector<48x64xf32>
    %40 = vector.extract_strided_slice %9 {offsets = [0, 4], sizes = [48, 1], strides = [1, 1]} : vector<48x9xf32> to vector<48x1xf32>
    %41 = vector.broadcast %40 : vector<48x1xf32> to vector<48x64xf32>
    %42 = arith.mulf %39, %41 : vector<48x64xf32>
    %43 = arith.addf %38, %42 : vector<48x64xf32>
    %c0_22 = arith.constant 0 : index
    %c129 = arith.constant 129 : index
    %44 = vector.load %arg6[%c0_22, %c129] : memref<48x201xf32, #tpu.memory_space<vmem>>, vector<48x64xf32>
    %45 = vector.extract_strided_slice %9 {offsets = [0, 5], sizes = [48, 1], strides = [1, 1]} : vector<48x9xf32> to vector<48x1xf32>
    %46 = vector.broadcast %45 : vector<48x1xf32> to vector<48x64xf32>
    %47 = arith.mulf %44, %46 : vector<48x64xf32>
    %48 = vector.broadcast %11 : vector<1x64xf32> to vector<48x64xf32>
    %49 = arith.mulf %47, %48 : vector<48x64xf32>
    %50 = arith.addf %43, %49 : vector<48x64xf32>
    %c0_23 = arith.constant 0 : index
    %c135 = arith.constant 135 : index
    %51 = vector.load %arg6[%c0_23, %c135] : memref<48x201xf32, #tpu.memory_space<vmem>>, vector<48x64xf32>
    %52 = vector.extract_strided_slice %9 {offsets = [0, 6], sizes = [48, 1], strides = [1, 1]} : vector<48x9xf32> to vector<48x1xf32>
    %53 = vector.broadcast %52 : vector<48x1xf32> to vector<48x64xf32>
    %54 = arith.mulf %51, %53 : vector<48x64xf32>
    %55 = vector.broadcast %10 : vector<1x64xf32> to vector<48x64xf32>
    %56 = arith.mulf %54, %55 : vector<48x64xf32>
    %57 = arith.addf %50, %56 : vector<48x64xf32>
    %c0_24 = arith.constant 0 : index
    %c136 = arith.constant 136 : index
    %58 = vector.load %arg6[%c0_24, %c136] : memref<48x201xf32, #tpu.memory_space<vmem>>, vector<48x64xf32>
    %59 = vector.extract_strided_slice %9 {offsets = [0, 7], sizes = [48, 1], strides = [1, 1]} : vector<48x9xf32> to vector<48x1xf32>
    %60 = vector.broadcast %59 : vector<48x1xf32> to vector<48x64xf32>
    %61 = arith.mulf %58, %60 : vector<48x64xf32>
    %62 = arith.addf %57, %61 : vector<48x64xf32>
    %c0_25 = arith.constant 0 : index
    %c137 = arith.constant 137 : index
    %63 = vector.load %arg6[%c0_25, %c137] : memref<48x201xf32, #tpu.memory_space<vmem>>, vector<48x64xf32>
    %64 = vector.extract_strided_slice %9 {offsets = [0, 8], sizes = [48, 1], strides = [1, 1]} : vector<48x9xf32> to vector<48x1xf32>
    %65 = vector.broadcast %64 : vector<48x1xf32> to vector<48x64xf32>
    %66 = arith.mulf %63, %65 : vector<48x64xf32>
    %67 = vector.broadcast %11 : vector<1x64xf32> to vector<48x64xf32>
    %68 = arith.mulf %66, %67 : vector<48x64xf32>
    %69 = arith.addf %62, %68 : vector<48x64xf32>
    %c0_26 = arith.constant 0 : index
    %c0_27 = arith.constant 0 : index
    %c0_28 = arith.constant 0 : index
    %70 = vector.load %arg5[%c0_26, %c0_27, %c0_28] : memref<1x48x64xf32, #tpu.memory_space<vmem>>, vector<1x48x64xf32>
    %71 = vector.shape_cast %70 : vector<1x48x64xf32> to vector<48x64xf32>
    %72 = vector.shape_cast %69 : vector<48x64xf32> to vector<1x48x64xf32>
    tpu.vector_store %arg5[%c0_26, %c0_27, %c0_28], %72 {strides = array<i32>} : memref<1x48x64xf32, #tpu.memory_space<vmem>>, vector<1x48x64xf32>,
    return
  }
  func.func @transform_0(%arg0: i32) -> (i32, i32, i32) {
    %c0_i32 = arith.constant 0 : i32
    %c0_i32_0 = arith.constant 0 : i32
    %c0_i32_1 = arith.constant 0 : i32
    return %arg0, %c0_i32, %c0_i32_0 : i32, i32, i32
  }
  func.func @transform_1(%arg0: i32) -> (i32, i32) {
    %c0_i32 = arith.constant 0 : i32
    %c0_i32_0 = arith.constant 0 : i32
    %c0_i32_1 = arith.constant 0 : i32
    return %c0_i32, %c0_i32_0 : i32, i32
  }
  func.func @transform_2(%arg0: i32) -> (i32, i32) {
    %c0_i32 = arith.constant 0 : i32
    %c0_i32_0 = arith.constant 0 : i32
    %c0_i32_1 = arith.constant 0 : i32
    return %c0_i32, %c0_i32_0 : i32, i32
  }
  func.func @transform_3(%arg0: i32) -> (i32, i32) {
    %c0_i32 = arith.constant 0 : i32
    %c0_i32_0 = arith.constant 0 : i32
    %c0_i32_1 = arith.constant 0 : i32
    return %c0_i32, %c0_i32_0 : i32, i32
  }
  func.func @transform_4(%arg0: i32) -> (i32, i32, i32) {
    %c0_i32 = arith.constant 0 : i32
    %c0_i32_0 = arith.constant 0 : i32
    %c0_i32_1 = arith.constant 0 : i32
    return %arg0, %c0_i32, %c0_i32_0 : i32, i32, i32
  }
}

</mosaic_0001>

<llo_original>
// kernel: tpu_custom_call.1
$region0: #{tpu_custom_call.1}
  #allocation0 [shape = 'u32[]', space=smem, size = 0x4, offset = 0x4, fixed_abs, tag = 'smem constant byte address 0x4 - core index']
  #allocation1 [shape = 'u32[72,128]{1,0:T(1,128)}', space=vmem, size = 0x9000, scoped, tag = 'internal scratch']
  #allocation2 [shape = 'f32[48,201]{1,0:T(8,128)}', space=vmem, size = 0xc000, scoped, tag = 'scratch operand']
  %s0 = inlined_call_operand.vmem [shape: f32[2,32,64], index: 0, kind: input, shape index: {}]
  %s1 = inlined_call_operand.vmem [shape: f32[48,32], index: 1, kind: input, shape index: {}]
  %s2 = inlined_call_operand.vmem [shape: f32[48,9], index: 2, kind: input, shape index: {}]
  %s3 = inlined_call_operand.vmem [shape: f32[2,64], index: 3, kind: input, shape index: {}]
  %s4 = inlined_call_operand.hbm [shape: f32[2,48,64], index: 4, kind: output, shape index: {}]
  %s5 = sld [smem:[#allocation0]]
  $region49: #{tpu_custom_call.1} parent=0
    _
  %s7 = ssub.s32 1, %s5
  %s8 = scalar_select 0, %s7, %s5
  $region1: #{tpu_custom_call.1} parent=0
    #allocation3 [shape = 'u8[49152]{0}', space=vmem, size = 0xc000, scoped, tag = 'output window, operand 0']
    #allocation4 [shape = 's32[2]{0}', space=sflag, size = 0x8, scoped, tag = 'scoped memory for tpu_custom_call.1']
    %9 = vsyncpa [#allocation4], 0
    %s10 = scalar_lea.sflag [#allocation4], 1
    %11 = vsyncpa %s10, 0
    loop: start=0, step=1, limit=4
    $region2: #{tpu_custom_call.1} parent=1 // loop_pre_header
      _
    $region3: #{tpu_custom_call.1} parent=1 // loop_header
      %s13 = sphi 0, %s17
      %p14 = scmp.ge.s32.totalorder %s13, 4
      %s23 = sphi 0, %s25
      %s26 = sphi 0, %s23
      %s27 = sphi 0, %s26
      %s43 = sphi 0, %s27
      %s47 = sphi 0, %s47
      %s49 = sphi 0, %s47
      %s50 = sphi 0, %s49
      %s64 = sphi 0, %s50
      %s68 = sphi 0, %s68
      %s70 = sphi 0, %s68
      %s71 = sphi 0, %s70
      %s85 = sphi 0, %s71
      %s89 = sphi 0, %s89
      %s91 = sphi 0, %s89
      %s92 = sphi 0, %s91
      %s106 = sphi 0, %s92
      %s112 = sphi 0, %s114
      %s115 = sphi 0, %s112
      %s116 = sphi 0, %s115
      %s132 = sphi 0, %s116
    $region4: #{tpu_custom_call.1} parent=1 // loop_header_branch
      %16 = sbr.rel (%p14) target = $region8
    $region5: #{tpu_custom_call.1} parent=1 // loop_body
      %s18 = ssub.s32 %s13, 1
      %s19 = ssub.s32 %s13, 2
      %s20 = sadd.s32 %s13, 1
      %s21 = ssub.s32 %s13, %s20
      %p22 = scmp.eq.s32.totalorder %s21, 0
      %s24 = sadd.s32 %s23, 1
      %s25 = scalar_select %p22, %s23, %s24
      %p28 = pneg %p22
      %p29 = scmp.eq.s32.totalorder %s13, 1
      %p30 = por %p28, %p29
      %p31 = scmp.ne.s32.totalorder %s23, %s26
      %p32 = scmp.eq.s32.totalorder %s13, 0
      %p33 = por %p31, %p32
      %p34 = scmp.ne.s32.totalorder %s23, %s26
      %p35 = scmp.eq.s32.totalorder %s18, 1
      %p36 = por %p34, %p35
      %p37 = scmp.ne.s32.totalorder %s26, %s27
      %p38 = scmp.eq.s32.totalorder %s18, 0
      %p39 = por %p37, %p38
      %p40 = scmp.ne.s32.totalorder %s26, %s27
      %p41 = scmp.eq.s32.totalorder %s19, 1
      %p42 = por %p40, %p41
      %p44 = scmp.ne.s32.totalorder %s27, %s43
      %p45 = scmp.eq.s32.totalorder %s19, 0
      %p46 = por %p44, %p45
      %s48 = sadd.s32 %s47, 1
      %p51 = scmp.eq.s32.totalorder %s13, 1
      %p52 = scmp.ne.s32.totalorder %s47, %s49
      %p53 = scmp.eq.s32.totalorder %s13, 0
      %p54 = por %p52, %p53
      %p55 = scmp.ne.s32.totalorder %s47, %s49
      %p56 = scmp.eq.s32.totalorder %s18, 1
      %p57 = por %p55, %p56
      %p58 = scmp.ne.s32.totalorder %s49, %s50
      %p59 = scmp.eq.s32.totalorder %s18, 0
      %p60 = por %p58, %p59
      %p61 = scmp.ne.s32.totalorder %s49, %s50
      %p62 = scmp.eq.s32.totalorder %s19, 1
      %p63 = por %p61, %p62
      %p65 = scmp.ne.s32.totalorder %s50, %s64
      %p66 = scmp.eq.s32.totalorder %s19, 0
      %p67 = por %p65, %p66
      %s69 = sadd.s32 %s68, 1
      %p72 = scmp.eq.s32.totalorder %s13, 1
      %p73 = scmp.ne.s32.totalorder %s68, %s70
      %p74 = scmp.eq.s32.totalorder %s13, 0
      %p75 = por %p73, %p74
      %p76 = scmp.ne.s32.totalorder %s68, %s70
      %p77 = scmp.eq.s32.totalorder %s18, 1
      %p78 = por %p76, %p77
      %p79 = scmp.ne.s32.totalorder %s70, %s71
      %p80 = scmp.eq.s32.totalorder %s18, 0
      %p81 = por %p79, %p80
      %p82 = scmp.ne.s32.totalorder %s70, %s71
      %p83 = scmp.eq.s32.totalorder %s19, 1
      %p84 = por %p82, %p83
      %p86 = scmp.ne.s32.totalorder %s71, %s85
      %p87 = scmp.eq.s32.totalorder %s19, 0
      %p88 = por %p86, %p87
      %s90 = sadd.s32 %s89, 1
      %p93 = scmp.eq.s32.totalorder %s13, 1
      %p94 = scmp.ne.s32.totalorder %s89, %s91
      %p95 = scmp.eq.s32.totalorder %s13, 0
      %p96 = por %p94, %p95
      %p97 = scmp.ne.s32.totalorder %s89, %s91
      %p98 = scmp.eq.s32.totalorder %s18, 1
      %p99 = por %p97, %p98
      %p100 = scmp.ne.s32.totalorder %s91, %s92
      %p101 = scmp.eq.s32.totalorder %s18, 0
      %p102 = por %p100, %p101
      %p103 = scmp.ne.s32.totalorder %s91, %s92
      %p104 = scmp.eq.s32.totalorder %s19, 1
      %p105 = por %p103, %p104
      %p107 = scmp.ne.s32.totalorder %s92, %s106
      %p108 = scmp.eq.s32.totalorder %s19, 0
      %p109 = por %p107, %p108
      %s110 = ssub.s32 %s13, %s20
      %p111 = scmp.eq.s32.totalorder %s110, 0
      %s113 = sadd.s32 %s112, 1
      %s114 = scalar_select %p111, %s112, %s113
      %p117 = pneg %p111
      %p118 = scmp.eq.s32.totalorder %s13, 1
      %p119 = por %p117, %p118
      %p120 = scmp.ne.s32.totalorder %s112, %s115
      %p121 = scmp.eq.s32.totalorder %s13, 0
      %p122 = por %p120, %p121
      %p123 = scmp.ne.s32.totalorder %s112, %s115
      %p124 = scmp.eq.s32.totalorder %s18, 1
      %p125 = por %p123, %p124
      %p126 = scmp.ne.s32.totalorder %s115, %s116
      %p127 = scmp.eq.s32.totalorder %s18, 0
      %p128 = por %p126, %p127
      %p129 = scmp.ne.s32.totalorder %s115, %s116
      %p130 = scmp.eq.s32.totalorder %s19, 1
      %p131 = por %p129, %p130
      %p133 = scmp.ne.s32.totalorder %s116, %s132
      %p134 = scmp.eq.s32.totalorder %s19, 0
      %p135 = por %p133, %p134
      %p136 = scmp.le.s32.totalorder 1, %s13
      %p137 = scmp.lt.s32.totalorder %s13, 3
      %p138 = pnand %p136, %p137
      %p139 = pneg %p138
      // Predicated region
      $region9: #{tpu_custom_call.1} parent=5 // pred_check
        _
      $region10: #{tpu_custom_call.1} parent=5 // pred_check_branch
        %141 = sbr.rel (%p138) target = $region12
      $region11: #{tpu_custom_call.1} parent=5 // pred_region
        %s142 = ssub.s32 %s13, 1
        // Predicated region
        $region13: #{tpu_custom_call.1} parent=11 // pred_check
          %p143 = pneg %p60
        $region14: #{tpu_custom_call.1} parent=11 // pred_check_branch
          %145 = sbr.rel (%p143) target = $region16
        $region15: #{tpu_custom_call.1} parent=11 // pred_region
          _
        $region16: #{tpu_custom_call.1} parent=11 // pred_fallthru
          _
        // Predicated region
        $region17: #{tpu_custom_call.1} parent=11 // pred_check
          %p146 = pneg %p81
        $region18: #{tpu_custom_call.1} parent=11 // pred_check_branch
          %148 = sbr.rel (%p146) target = $region20
        $region19: #{tpu_custom_call.1} parent=11 // pred_region
          _
        $region20: #{tpu_custom_call.1} parent=11 // pred_fallthru
          _
        // Predicated region
        $region21: #{tpu_custom_call.1} parent=11 // pred_check
          %p149 = pneg %p102
        $region22: #{tpu_custom_call.1} parent=11 // pred_check_branch
          %151 = sbr.rel (%p149) target = $region24
        $region23: #{tpu_custom_call.1} parent=11 // pred_region
          _
        $region24: #{tpu_custom_call.1} parent=11 // pred_fallthru
          _
      $region12: #{tpu_custom_call.1} parent=5 // pred_fallthru
        _
      %p152 = scmp.lt.s32.totalorder %s13, 2
      // Predicated region
      $region25: #{tpu_custom_call.1} parent=5 // pred_check
        %p153 = pneg %p152
      $region26: #{tpu_custom_call.1} parent=5 // pred_check_branch
        %155 = sbr.rel (%p153) target = $region28
      $region27: #{tpu_custom_call.1} parent=5 // pred_region
        // Predicated region
        $region29: #{tpu_custom_call.1} parent=27 // pred_check
          %p156 = pneg %p33
        $region30: #{tpu_custom_call.1} parent=27 // pred_check_branch
          %158 = sbr.rel (%p156) target = $region32
        $region31: #{tpu_custom_call.1} parent=27 // pred_region
          %p159 = scmp.lt.s32.totalorder %s13, 1
          %s160 = scalar_select %p159, %s13, 1
          %s161 = smul.addr %s160, 4
          %s162 = smul.addr %s161, 8
          %s163 = scalar_lea.vmem %s0, %s162
        $region32: #{tpu_custom_call.1} parent=27 // pred_fallthru
          _
      $region28: #{tpu_custom_call.1} parent=5 // pred_fallthru
        _
      %p164 = scmp.le.s32.totalorder 1, %s13
      %p165 = scmp.lt.s32.totalorder %s13, 3
      %p166 = pnand %p164, %p165
      %p167 = pneg %p166
      // Predicated region
      $region33: #{tpu_custom_call.1} parent=5 // pred_check
        _
      $region34: #{tpu_custom_call.1} parent=5 // pred_check_branch
        %169 = sbr.rel (%p166) target = $region36
      $region35: #{tpu_custom_call.1} parent=5 // pred_region
        %s170 = ssub.s32 %s13, 1
        %p171 = scmp.lt.s32.totalorder %s18, 1
        %s172 = scalar_select %p171, %s18, 1
        %s173 = smul.addr %s172, 4
        %s174 = smul.addr %s173, 8
        %s175 = scalar_lea.vmem %s0, %s174
        %p176 = pneg %p39
        %p177 = pneg %p36
        %p178 = pneg %p60
        %p179 = pneg %p57
        %p180 = pneg %p81
        %p181 = pneg %p78
        %p182 = pneg %p102
        %p183 = pneg %p99
        %p184 = pneg %p128
        %p185 = pneg %p125
        %s186 = sand.u32 %s115, 1
        %s187 = scalar_lea.sflag [#allocation4], %s186
        %s188 = sand.u32 %s115, 1
        %s189 = smul.addr %s188, 48
        %s190 = scalar_lea.vmem [#allocation3], %s189
        %p191 = scmp.lt.s32.totalorder %s18, 1
        %s192 = scalar_select %p191, %s18, 1
        %s193 = smul.addr %s192, 4
        %s194 = smul.addr %s193, 8
        %s195 = scalar_lea.vmem %s0, %s194
        %v196 = vld [vmem:[%s195] sm:$0xff]
        %v197 = vld [vmem:[%s195 + $0x8] sm:$0xff]
        %v198 = vld [vmem:[%s195 + $0x10] sm:$0xff]
        %v199 = vld [vmem:[%s195 + $0x18] sm:$0xff]
        %v200 = vld [vmem:[%s1] sm:$0xff]
        %v201 = vld [vmem:[%s1 + $0x8] sm:$0xff]
        %v202 = vld [vmem:[%s1 + $0x10] sm:$0xff]
        %v203 = vld [vmem:[%s1 + $0x18] sm:$0xff]
        %v204 = vld [vmem:[%s1 + $0x20] sm:$0xff]
        %v205 = vld [vmem:[%s1 + $0x28] sm:$0xff]
        %vm206 = vcmask 261120
        %v208 = vsel %vm206, %v200, 0
        %v211 = vsel %vm206, %v201, 0
        %v214 = vsel %vm206, %v202, 0
        %v217 = vsel %vm206, %v203, 0
        %v220 = vsel %vm206, %v204, 0
        %v223 = vsel %vm206, %v205, 0
        %225 = vmatpush.msra.mxu0 0.0
        %226 = vmatpush.msra.mxu0 0.0
        %227 = vmatpush.msra.mxu0 0.0
        %228 = vmatpush.msra.mxu0 0.0
        %229 = vmatpush.msra.mxu0 0.0
        %230 = vmatpush.msra.mxu0 0.0
        %231 = vmatpush.msra.mxu0 0.0
        %232 = vmatpush.msra.mxu0 0.0
        %233 = vmatpush.msra.mxu0 0.0
        %234 = vmatpush.msra.mxu0 0.0
        %235 = vmatpush.msra.mxu0 0.0
        %236 = vmatpush.msra.mxu0 0.0
        %237 = vmatpush.msra.mxu0 %v199
        %238 = vmatpush.msra.mxu0 %v198
        %239 = vmatpush.msra.mxu0 %v197
        %240 = vmatpush.msra.mxu0 %v196
        %241 = vmatmul.f32.gmra.mxu0 %v208
        %v242 = vpop.f32.mrf.mxu0
        %v243 = vadd.f32 0.0, %v242
        %244 = vmatmul.f32.gmra.mxu0 %v211
        %v245 = vpop.f32.mrf.mxu0
        %v246 = vadd.f32 0.0, %v245
        %247 = vmatmul.f32.gmra.mxu0 %v214
        %v248 = vpop.f32.mrf.mxu0
        %v249 = vadd.f32 0.0, %v248
        %250 = vmatmul.f32.gmra.mxu0 %v217
        %v251 = vpop.f32.mrf.mxu0
        %v252 = vadd.f32 0.0, %v251
        %253 = vmatmul.f32.gmra.mxu0 %v220
        %v254 = vpop.f32.mrf.mxu0
        %v255 = vadd.f32 0.0, %v254
        %256 = vmatmul.f32.gmra.mxu0 %v223
        %v257 = vpop.f32.mrf.mxu0
        %v258 = vadd.f32 0.0, %v257
        %259 = vdwg.mxu0
        %260 = vst [vmem:[#allocation2] sm:$0xff] 0.0
        %261 = vst [vmem:[#allocation2 + $0x10] sm:$0xff] 0.0
        %262 = vst [vmem:[#allocation2 + $0x20] sm:$0xff] 0.0
        %263 = vst [vmem:[#allocation2 + $0x30] sm:$0xff] 0.0
        %264 = vst [vmem:[#allocation2 + $0x40] sm:$0xff] 0.0
        %265 = vst [vmem:[#allocation2 + $0x50] sm:$0xff] 0.0
        %vm266 = vcmask 597504
        %267 = vst.msk [vmem:[#allocation2 + $0x8] sm:$0xff] %vm266, 0.0
        %268 = vst.msk [vmem:[#allocation2 + $0x18] sm:$0xff] %vm266, 0.0
        %269 = vst.msk [vmem:[#allocation2 + $0x28] sm:$0xff] %vm266, 0.0
        %270 = vst.msk [vmem:[#allocation2 + $0x38] sm:$0xff] %vm266, 0.0
        %271 = vst.msk [vmem:[#allocation2 + $0x48] sm:$0xff] %vm266, 0.0
        %272 = vst.msk [vmem:[#allocation2 + $0x58] sm:$0xff] %vm266, 0.0
        %vm273 = vcmask 523264
        %274 = vst.msk [vmem:[#allocation2 + $0x8] sm:$0xff] %vm273, %v243
        %275 = vst.msk [vmem:[#allocation2 + $0x18] sm:$0xff] %vm273, %v246
        %276 = vst.msk [vmem:[#allocation2 + $0x28] sm:$0xff] %vm273, %v249
        %277 = vst.msk [vmem:[#allocation2 + $0x38] sm:$0xff] %vm273, %v252
        %278 = vst.msk [vmem:[#allocation2 + $0x48] sm:$0xff] %vm273, %v255
        %279 = vst.msk [vmem:[#allocation2 + $0x58] sm:$0xff] %vm273, %v258
        %v280 = vld [vmem:[%s2] sm:$0xff]
        %v281 = vld [vmem:[%s2 + $0x8] sm:$0xff]
        %v282 = vld [vmem:[%s2 + $0x10] sm:$0xff]
        %v283 = vld [vmem:[%s2 + $0x18] sm:$0xff]
        %v284 = vld [vmem:[%s2 + $0x20] sm:$0xff]
        %v285 = vld [vmem:[%s2 + $0x28] sm:$0xff]
        %v286 = vld [vmem:[%s3] sm:$0x1]
        %v287 = vld [vmem:[%s3 + $0x1] sm:$0x1]
        %v288 = vld [vmem:[#allocation2] sm:$0xff]
        %v289 = vld [vmem:[#allocation2 + $0x8] sm:$0xff]
        %v290 = vld [vmem:[#allocation2 + $0x10] sm:$0xff]
        %v291 = vld [vmem:[#allocation2 + $0x18] sm:$0xff]
        %v292 = vld [vmem:[#allocation2 + $0x20] sm:$0xff]
        %v293 = vld [vmem:[#allocation2 + $0x28] sm:$0xff]
        %v294 = vld [vmem:[#allocation2 + $0x30] sm:$0xff]
        %v295 = vld [vmem:[#allocation2 + $0x38] sm:$0xff]
        %v296 = vld [vmem:[#allocation2 + $0x40] sm:$0xff]
        %v297 = vld [vmem:[#allocation2 + $0x48] sm:$0xff]
        %v298 = vld [vmem:[#allocation2 + $0x50] sm:$0xff]
        %v299 = vld [vmem:[#allocation2 + $0x58] sm:$0xff]
        %301 = vset.pattern.permute.xlu0 0
        %302 = vperm.xlu0 %301, %v280
        %v303 = vpop.permute.xlu0 %302
        %306 = vset.pattern.permute.xlu0 0
        %307 = vperm.xlu0 %306, %v281
        %v308 = vpop.permute.xlu0 %307
        %311 = vset.pattern.permute.xlu0 0
        %312 = vperm.xlu0 %311, %v282
        %v313 = vpop.permute.xlu0 %312
        %316 = vset.pattern.permute.xlu0 0
        %317 = vperm.xlu0 %316, %v283
        %v318 = vpop.permute.xlu0 %317
        %321 = vset.pattern.permute.xlu0 0
        %322 = vperm.xlu0 %321, %v284
        %v323 = vpop.permute.xlu0 %322
        %326 = vset.pattern.permute.xlu0 0
        %327 = vperm.xlu0 %326, %v285
        %v328 = vpop.permute.xlu0 %327
        %v330 = vmul.f32 %v288, %v303
        %v331 = vmul.f32 %v289, %v303
        %v332 = vmul.f32 %v290, %v308
        %v333 = vmul.f32 %v291, %v308
        %v334 = vmul.f32 %v292, %v313
        %v335 = vmul.f32 %v293, %v313
        %v336 = vmul.f32 %v294, %v318
        %v337 = vmul.f32 %v295, %v318
        %v338 = vmul.f32 %v296, %v323
        %v339 = vmul.f32 %v297, %v323
        %v340 = vmul.f32 %v298, %v328
        %v341 = vmul.f32 %v299, %v328
        %v342 = vperm.slane %v286, 0
        %344 = vrot.lane.b32.xlu0 %v342, 119
        %v345 = vpop.permute.xlu0 %344
        %v347 = vmul.f32 %v330, %v345
        %v348 = vmul.f32 %v331, %v345
        %v349 = vmul.f32 %v332, %v345
        %v350 = vmul.f32 %v333, %v345
        %v351 = vmul.f32 %v334, %v345
        %v352 = vmul.f32 %v335, %v345
        %v353 = vmul.f32 %v336, %v345
        %v354 = vmul.f32 %v337, %v345
        %v355 = vmul.f32 %v338, %v345
        %v356 = vmul.f32 %v339, %v345
        %v357 = vmul.f32 %v340, %v345
        %v358 = vmul.f32 %v341, %v345
        %v359 = vadd.f32 %v347, 0.0
        %v360 = vadd.f32 %v348, 0.0
        %v361 = vadd.f32 %v349, 0.0
        %v362 = vadd.f32 %v350, 0.0
        %v363 = vadd.f32 %v351, 0.0
        %v364 = vadd.f32 %v352, 0.0
        %v365 = vadd.f32 %v353, 0.0
        %v366 = vadd.f32 %v354, 0.0
        %v367 = vadd.f32 %v355, 0.0
        %v368 = vadd.f32 %v356, 0.0
        %v369 = vadd.f32 %v357, 0.0
        %v370 = vadd.f32 %v358, 0.0
        %371 = vset.pattern.permute.xlu0 1
        %372 = vperm.xlu0 %371, %v280
        %v373 = vpop.permute.xlu0 %372
        %375 = vset.pattern.permute.xlu0 1
        %376 = vperm.xlu0 %375, %v281
        %v377 = vpop.permute.xlu0 %376
        %379 = vset.pattern.permute.xlu0 1
        %380 = vperm.xlu0 %379, %v282
        %v381 = vpop.permute.xlu0 %380
        %383 = vset.pattern.permute.xlu0 1
        %384 = vperm.xlu0 %383, %v283
        %v385 = vpop.permute.xlu0 %384
        %387 = vset.pattern.permute.xlu0 1
        %388 = vperm.xlu0 %387, %v284
        %v389 = vpop.permute.xlu0 %388
        %391 = vset.pattern.permute.xlu0 1
        %392 = vperm.xlu0 %391, %v285
        %v393 = vpop.permute.xlu0 %392
        %v395 = vmul.f32 %v288, %v373
        %v396 = vmul.f32 %v289, %v373
        %v397 = vmul.f32 %v290, %v377
        %v398 = vmul.f32 %v291, %v377
        %v399 = vmul.f32 %v292, %v381
        %v400 = vmul.f32 %v293, %v381
        %v401 = vmul.f32 %v294, %v385
        %v402 = vmul.f32 %v295, %v385
        %v403 = vmul.f32 %v296, %v389
        %v404 = vmul.f32 %v297, %v389
        %v405 = vmul.f32 %v298, %v393
        %v406 = vmul.f32 %v299, %v393
        %419 = vrot.lane.b32.xlu0 %v395, 127
        %v420 = vpop.permute.xlu0 %419
        %421 = vrot.lane.b32.xlu0 %v396, 127
        %v422 = vpop.permute.xlu0 %421
        %423 = vrot.lane.b32.xlu0 %v397, 127
        %v424 = vpop.permute.xlu0 %423
        %425 = vrot.lane.b32.xlu0 %v398, 127
        %v426 = vpop.permute.xlu0 %425
        %427 = vrot.lane.b32.xlu0 %v399, 127
        %v428 = vpop.permute.xlu0 %427
        %429 = vrot.lane.b32.xlu0 %v400, 127
        %v430 = vpop.permute.xlu0 %429
        %431 = vrot.lane.b32.xlu0 %v401, 127
        %v432 = vpop.permute.xlu0 %431
        %433 = vrot.lane.b32.xlu0 %v402, 127
        %v434 = vpop.permute.xlu0 %433
        %435 = vrot.lane.b32.xlu0 %v403, 127
        %v436 = vpop.permute.xlu0 %435
        %437 = vrot.lane.b32.xlu0 %v404, 127
        %v438 = vpop.permute.xlu0 %437
        %439 = vrot.lane.b32.xlu0 %v405, 127
        %v440 = vpop.permute.xlu0 %439
        %441 = vrot.lane.b32.xlu0 %v406, 127
        %v442 = vpop.permute.xlu0 %441
        %vm443 = vcmask 1039360
        %v444 = vsel %vm443, %v420, %v422
        %v445 = vsel %vm443, %v424, %v426
        %v446 = vsel %vm443, %v428, %v430
        %v447 = vsel %vm443, %v432, %v434
        %v448 = vsel %vm443, %v436, %v438
        %v449 = vsel %vm443, %v440, %v442
        %v462 = vadd.f32 %v359, %v444
        %v463 = vadd.f32 %v360, %v422
        %v464 = vadd.f32 %v361, %v445
        %v465 = vadd.f32 %v362, %v426
        %v466 = vadd.f32 %v363, %v446
        %v467 = vadd.f32 %v364, %v430
        %v468 = vadd.f32 %v365, %v447
        %v469 = vadd.f32 %v366, %v434
        %v470 = vadd.f32 %v367, %v448
        %v471 = vadd.f32 %v368, %v438
        %v472 = vadd.f32 %v369, %v449
        %v473 = vadd.f32 %v370, %v442
        %474 = vset.pattern.permute.xlu0 2
        %475 = vperm.xlu0 %474, %v280
        %v476 = vpop.permute.xlu0 %475
        %478 = vset.pattern.permute.xlu0 2
        %479 = vperm.xlu0 %478, %v281
        %v480 = vpop.permute.xlu0 %479
        %482 = vset.pattern.permute.xlu0 2
        %483 = vperm.xlu0 %482, %v282
        %v484 = vpop.permute.xlu0 %483
        %486 = vset.pattern.permute.xlu0 2
        %487 = vperm.xlu0 %486, %v283
        %v488 = vpop.permute.xlu0 %487
        %490 = vset.pattern.permute.xlu0 2
        %491 = vperm.xlu0 %490, %v284
        %v492 = vpop.permute.xlu0 %491
        %494 = vset.pattern.permute.xlu0 2
        %495 = vperm.xlu0 %494, %v285
        %v496 = vpop.permute.xlu0 %495
        %v498 = vmul.f32 %v288, %v476
        %v499 = vmul.f32 %v289, %v476
        %v500 = vmul.f32 %v290, %v480
        %v501 = vmul.f32 %v291, %v480
        %v502 = vmul.f32 %v292, %v484
        %v503 = vmul.f32 %v293, %v484
        %v504 = vmul.f32 %v294, %v488
        %v505 = vmul.f32 %v295, %v488
        %v506 = vmul.f32 %v296, %v492
        %v507 = vmul.f32 %v297, %v492
        %v508 = vmul.f32 %v298, %v496
        %v509 = vmul.f32 %v299, %v496
        %v510 = vperm.slane %v287, 0
        %512 = vrot.lane.b32.xlu0 %v510, 121
        %v513 = vpop.permute.xlu0 %512
        %v515 = vmul.f32 %v498, %v513
        %v516 = vmul.f32 %v499, %v513
        %v517 = vmul.f32 %v500, %v513
        %v518 = vmul.f32 %v501, %v513
        %v519 = vmul.f32 %v502, %v513
        %v520 = vmul.f32 %v503, %v513
        %v521 = vmul.f32 %v504, %v513
        %v522 = vmul.f32 %v505, %v513
        %v523 = vmul.f32 %v506, %v513
        %v524 = vmul.f32 %v507, %v513
        %v525 = vmul.f32 %v508, %v513
        %v526 = vmul.f32 %v509, %v513
        %539 = vrot.lane.b32.xlu0 %v515, 126
        %v540 = vpop.permute.xlu0 %539
        %541 = vrot.lane.b32.xlu0 %v516, 126
        %v542 = vpop.permute.xlu0 %541
        %543 = vrot.lane.b32.xlu0 %v517, 126
        %v544 = vpop.permute.xlu0 %543
        %545 = vrot.lane.b32.xlu0 %v518, 126
        %v546 = vpop.permute.xlu0 %545
        %547 = vrot.lane.b32.xlu0 %v519, 126
        %v548 = vpop.permute.xlu0 %547
        %549 = vrot.lane.b32.xlu0 %v520, 126
        %v550 = vpop.permute.xlu0 %549
        %551 = vrot.lane.b32.xlu0 %v521, 126
        %v552 = vpop.permute.xlu0 %551
        %553 = vrot.lane.b32.xlu0 %v522, 126
        %v554 = vpop.permute.xlu0 %553
        %555 = vrot.lane.b32.xlu0 %v523, 126
        %v556 = vpop.permute.xlu0 %555
        %557 = vrot.lane.b32.xlu0 %v524, 126
        %v558 = vpop.permute.xlu0 %557
        %559 = vrot.lane.b32.xlu0 %v525, 126
        %v560 = vpop.permute.xlu0 %559
        %561 = vrot.lane.b32.xlu0 %v526, 126
        %v562 = vpop.permute.xlu0 %561
        %vm563 = vcmask 1031168
        %v564 = vsel %vm563, %v540, %v542
        %v565 = vsel %vm563, %v544, %v546
        %v566 = vsel %vm563, %v548, %v550
        %v567 = vsel %vm563, %v552, %v554
        %v568 = vsel %vm563, %v556, %v558
        %v569 = vsel %vm563, %v560, %v562
        %v582 = vadd.f32 %v462, %v564
        %v583 = vadd.f32 %v463, %v542
        %v584 = vadd.f32 %v464, %v565
        %v585 = vadd.f32 %v465, %v546
        %v586 = vadd.f32 %v466, %v566
        %v587 = vadd.f32 %v467, %v550
        %v588 = vadd.f32 %v468, %v567
        %v589 = vadd.f32 %v469, %v554
        %v590 = vadd.f32 %v470, %v568
        %v591 = vadd.f32 %v471, %v558
        %v592 = vadd.f32 %v472, %v569
        %v593 = vadd.f32 %v473, %v562
        %594 = vset.pattern.permute.xlu0 3
        %595 = vperm.xlu0 %594, %v280
        %v596 = vpop.permute.xlu0 %595
        %598 = vset.pattern.permute.xlu0 3
        %599 = vperm.xlu0 %598, %v281
        %v600 = vpop.permute.xlu0 %599
        %602 = vset.pattern.permute.xlu0 3
        %603 = vperm.xlu0 %602, %v282
        %v604 = vpop.permute.xlu0 %603
        %606 = vset.pattern.permute.xlu0 3
        %607 = vperm.xlu0 %606, %v283
        %v608 = vpop.permute.xlu0 %607
        %610 = vset.pattern.permute.xlu0 3
        %611 = vperm.xlu0 %610, %v284
        %v612 = vpop.permute.xlu0 %611
        %614 = vset.pattern.permute.xlu0 3
        %615 = vperm.xlu0 %614, %v285
        %v616 = vpop.permute.xlu0 %615
        %v618 = vmul.f32 %v288, %v596
        %v619 = vmul.f32 %v289, %v596
        %v620 = vmul.f32 %v290, %v600
        %v621 = vmul.f32 %v291, %v600
        %v622 = vmul.f32 %v292, %v604
        %v623 = vmul.f32 %v293, %v604
        %v624 = vmul.f32 %v294, %v608
        %v625 = vmul.f32 %v295, %v608
        %v626 = vmul.f32 %v296, %v612
        %v627 = vmul.f32 %v297, %v612
        %v628 = vmul.f32 %v298, %v616
        %v629 = vmul.f32 %v299, %v616
        %630 = vrot.lane.b32.xlu0 %v342, 127
        %v631 = vpop.permute.xlu0 %630
        %v633 = vmul.f32 %v618, %v631
        %v634 = vmul.f32 %v619, %v631
        %v635 = vmul.f32 %v620, %v631
        %v636 = vmul.f32 %v621, %v631
        %v637 = vmul.f32 %v622, %v631
        %v638 = vmul.f32 %v623, %v631
        %v639 = vmul.f32 %v624, %v631
        %v640 = vmul.f32 %v625, %v631
        %v641 = vmul.f32 %v626, %v631
        %v642 = vmul.f32 %v627, %v631
        %v643 = vmul.f32 %v628, %v631
        %v644 = vmul.f32 %v629, %v631
        %657 = vrot.lane.b32.xlu0 %v633, 120
        %v658 = vpop.permute.xlu0 %657
        %659 = vrot.lane.b32.xlu0 %v634, 120
        %v660 = vpop.permute.xlu0 %659
        %661 = vrot.lane.b32.xlu0 %v635, 120
        %v662 = vpop.permute.xlu0 %661
        %663 = vrot.lane.b32.xlu0 %v636, 120
        %v664 = vpop.permute.xlu0 %663
        %665 = vrot.lane.b32.xlu0 %v637, 120
        %v666 = vpop.permute.xlu0 %665
        %667 = vrot.lane.b32.xlu0 %v638, 120
        %v668 = vpop.permute.xlu0 %667
        %669 = vrot.lane.b32.xlu0 %v639, 120
        %v670 = vpop.permute.xlu0 %669
        %671 = vrot.lane.b32.xlu0 %v640, 120
        %v672 = vpop.permute.xlu0 %671
        %673 = vrot.lane.b32.xlu0 %v641, 120
        %v674 = vpop.permute.xlu0 %673
        %675 = vrot.lane.b32.xlu0 %v642, 120
        %v676 = vpop.permute.xlu0 %675
        %677 = vrot.lane.b32.xlu0 %v643, 120
        %v678 = vpop.permute.xlu0 %677
        %679 = vrot.lane.b32.xlu0 %v644, 120
        %v680 = vpop.permute.xlu0 %679
        %vm681 = vcmask 982016
        %v682 = vsel %vm681, %v658, %v660
        %v683 = vsel %vm681, %v662, %v664
        %v684 = vsel %vm681, %v666, %v668
        %v685 = vsel %vm681, %v670, %v672
        %v686 = vsel %vm681, %v674, %v676
        %v687 = vsel %vm681, %v678, %v680
        %v700 = vadd.f32 %v582, %v682
        %v701 = vadd.f32 %v583, %v660
        %v702 = vadd.f32 %v584, %v683
        %v703 = vadd.f32 %v585, %v664
        %v704 = vadd.f32 %v586, %v684
        %v705 = vadd.f32 %v587, %v668
        %v706 = vadd.f32 %v588, %v685
        %v707 = vadd.f32 %v589, %v672
        %v708 = vadd.f32 %v590, %v686
        %v709 = vadd.f32 %v591, %v676
        %v710 = vadd.f32 %v592, %v687
        %v711 = vadd.f32 %v593, %v680
        %712 = vset.pattern.permute.xlu0 4
        %713 = vperm.xlu0 %712, %v280
        %v714 = vpop.permute.xlu0 %713
        %716 = vset.pattern.permute.xlu0 4
        %717 = vperm.xlu0 %716, %v281
        %v718 = vpop.permute.xlu0 %717
        %720 = vset.pattern.permute.xlu0 4
        %721 = vperm.xlu0 %720, %v282
        %v722 = vpop.permute.xlu0 %721
        %724 = vset.pattern.permute.xlu0 4
        %725 = vperm.xlu0 %724, %v283
        %v726 = vpop.permute.xlu0 %725
        %728 = vset.pattern.permute.xlu0 4
        %729 = vperm.xlu0 %728, %v284
        %v730 = vpop.permute.xlu0 %729
        %732 = vset.pattern.permute.xlu0 4
        %733 = vperm.xlu0 %732, %v285
        %v734 = vpop.permute.xlu0 %733
        %v736 = vmul.f32 %v289, %v714
        %v737 = vmul.f32 %v291, %v718
        %v738 = vmul.f32 %v293, %v722
        %v739 = vmul.f32 %v295, %v726
        %v740 = vmul.f32 %v297, %v730
        %v741 = vmul.f32 %v299, %v734
        %748 = vrot.lane.b32.xlu0 %v736, 119
        %v749 = vpop.permute.xlu0 %748
        %750 = vrot.lane.b32.xlu0 %v737, 119
        %v751 = vpop.permute.xlu0 %750
        %752 = vrot.lane.b32.xlu0 %v738, 119
        %v753 = vpop.permute.xlu0 %752
        %754 = vrot.lane.b32.xlu0 %v739, 119
        %v755 = vpop.permute.xlu0 %754
        %756 = vrot.lane.b32.xlu0 %v740, 119
        %v757 = vpop.permute.xlu0 %756
        %758 = vrot.lane.b32.xlu0 %v741, 119
        %v759 = vpop.permute.xlu0 %758
        %v766 = vadd.f32 %v700, %v749
        %v767 = vadd.f32 %v701, %v749
        %v768 = vadd.f32 %v702, %v751
        %v769 = vadd.f32 %v703, %v751
        %v770 = vadd.f32 %v704, %v753
        %v771 = vadd.f32 %v705, %v753
        %v772 = vadd.f32 %v706, %v755
        %v773 = vadd.f32 %v707, %v755
        %v774 = vadd.f32 %v708, %v757
        %v775 = vadd.f32 %v709, %v757
        %v776 = vadd.f32 %v710, %v759
        %v777 = vadd.f32 %v711, %v759
        %778 = vset.pattern.permute.xlu0 5
        %779 = vperm.xlu0 %778, %v280
        %v780 = vpop.permute.xlu0 %779
        %782 = vset.pattern.permute.xlu0 5
        %783 = vperm.xlu0 %782, %v281
        %v784 = vpop.permute.xlu0 %783
        %786 = vset.pattern.permute.xlu0 5
        %787 = vperm.xlu0 %786, %v282
        %v788 = vpop.permute.xlu0 %787
        %790 = vset.pattern.permute.xlu0 5
        %791 = vperm.xlu0 %790, %v283
        %v792 = vpop.permute.xlu0 %791
        %794 = vset.pattern.permute.xlu0 5
        %795 = vperm.xlu0 %794, %v284
        %v796 = vpop.permute.xlu0 %795
        %798 = vset.pattern.permute.xlu0 5
        %799 = vperm.xlu0 %798, %v285
        %v800 = vpop.permute.xlu0 %799
        %v802 = vmul.f32 %v289, %v780
        %v803 = vmul.f32 %v291, %v784
        %v804 = vmul.f32 %v293, %v788
        %v805 = vmul.f32 %v295, %v792
        %v806 = vmul.f32 %v297, %v796
        %v807 = vmul.f32 %v299, %v800
        %808 = vrot.lane.b32.xlu0 %v510, 1
        %v809 = vpop.permute.xlu0 %808
        %v811 = vmul.f32 %v802, %v809
        %v812 = vmul.f32 %v803, %v809
        %v813 = vmul.f32 %v804, %v809
        %v814 = vmul.f32 %v805, %v809
        %v815 = vmul.f32 %v806, %v809
        %v816 = vmul.f32 %v807, %v809
        %823 = vrot.lane.b32.xlu0 %v811, 118
        %v824 = vpop.permute.xlu0 %823
        %825 = vrot.lane.b32.xlu0 %v812, 118
        %v826 = vpop.permute.xlu0 %825
        %827 = vrot.lane.b32.xlu0 %v813, 118
        %v828 = vpop.permute.xlu0 %827
        %829 = vrot.lane.b32.xlu0 %v814, 118
        %v830 = vpop.permute.xlu0 %829
        %831 = vrot.lane.b32.xlu0 %v815, 118
        %v832 = vpop.permute.xlu0 %831
        %833 = vrot.lane.b32.xlu0 %v816, 118
        %v834 = vpop.permute.xlu0 %833
        %v841 = vadd.f32 %v766, %v824
        %v842 = vadd.f32 %v767, %v824
        %v843 = vadd.f32 %v768, %v826
        %v844 = vadd.f32 %v769, %v826
        %v845 = vadd.f32 %v770, %v828
        %v846 = vadd.f32 %v771, %v828
        %v847 = vadd.f32 %v772, %v830
        %v848 = vadd.f32 %v773, %v830
        %v849 = vadd.f32 %v774, %v832
        %v850 = vadd.f32 %v775, %v832
        %v851 = vadd.f32 %v776, %v834
        %v852 = vadd.f32 %v777, %v834
        %853 = vset.pattern.permute.xlu0 6
        %854 = vperm.xlu0 %853, %v280
        %v855 = vpop.permute.xlu0 %854
        %857 = vset.pattern.permute.xlu0 6
        %858 = vperm.xlu0 %857, %v281
        %v859 = vpop.permute.xlu0 %858
        %861 = vset.pattern.permute.xlu0 6
        %862 = vperm.xlu0 %861, %v282
        %v863 = vpop.permute.xlu0 %862
        %865 = vset.pattern.permute.xlu0 6
        %866 = vperm.xlu0 %865, %v283
        %v867 = vpop.permute.xlu0 %866
        %869 = vset.pattern.permute.xlu0 6
        %870 = vperm.xlu0 %869, %v284
        %v871 = vpop.permute.xlu0 %870
        %873 = vset.pattern.permute.xlu0 6
        %874 = vperm.xlu0 %873, %v285
        %v875 = vpop.permute.xlu0 %874
        %v877 = vmul.f32 %v289, %v855
        %v878 = vmul.f32 %v291, %v859
        %v879 = vmul.f32 %v293, %v863
        %v880 = vmul.f32 %v295, %v867
        %v881 = vmul.f32 %v297, %v871
        %v882 = vmul.f32 %v299, %v875
        %883 = vrot.lane.b32.xlu0 %v342, 7
        %v884 = vpop.permute.xlu0 %883
        %v886 = vmul.f32 %v877, %v884
        %v887 = vmul.f32 %v878, %v884
        %v888 = vmul.f32 %v879, %v884
        %v889 = vmul.f32 %v880, %v884
        %v890 = vmul.f32 %v881, %v884
        %v891 = vmul.f32 %v882, %v884
        %898 = vrot.lane.b32.xlu0 %v886, 112
        %v899 = vpop.permute.xlu0 %898
        %900 = vrot.lane.b32.xlu0 %v887, 112
        %v901 = vpop.permute.xlu0 %900
        %902 = vrot.lane.b32.xlu0 %v888, 112
        %v903 = vpop.permute.xlu0 %902
        %904 = vrot.lane.b32.xlu0 %v889, 112
        %v905 = vpop.permute.xlu0 %904
        %906 = vrot.lane.b32.xlu0 %v890, 112
        %v907 = vpop.permute.xlu0 %906
        %908 = vrot.lane.b32.xlu0 %v891, 112
        %v909 = vpop.permute.xlu0 %908
        %v916 = vadd.f32 %v841, %v899
        %v917 = vadd.f32 %v842, %v899
        %v918 = vadd.f32 %v843, %v901
        %v919 = vadd.f32 %v844, %v901
        %v920 = vadd.f32 %v845, %v903
        %v921 = vadd.f32 %v846, %v903
        %v922 = vadd.f32 %v847, %v905
        %v923 = vadd.f32 %v848, %v905
        %v924 = vadd.f32 %v849, %v907
        %v925 = vadd.f32 %v850, %v907
        %v926 = vadd.f32 %v851, %v909
        %v927 = vadd.f32 %v852, %v909
        %928 = vset.pattern.permute.xlu0 7
        %929 = vperm.xlu0 %928, %v280
        %v930 = vpop.permute.xlu0 %929
        %932 = vset.pattern.permute.xlu0 7
        %933 = vperm.xlu0 %932, %v281
        %v934 = vpop.permute.xlu0 %933
        %936 = vset.pattern.permute.xlu0 7
        %937 = vperm.xlu0 %936, %v282
        %v938 = vpop.permute.xlu0 %937
        %940 = vset.pattern.permute.xlu0 7
        %941 = vperm.xlu0 %940, %v283
        %v942 = vpop.permute.xlu0 %941
        %944 = vset.pattern.permute.xlu0 7
        %945 = vperm.xlu0 %944, %v284
        %v946 = vpop.permute.xlu0 %945
        %948 = vset.pattern.permute.xlu0 7
        %949 = vperm.xlu0 %948, %v285
        %v950 = vpop.permute.xlu0 %949
        %v952 = vmul.f32 %v289, %v930
        %v953 = vmul.f32 %v291, %v934
        %v954 = vmul.f32 %v293, %v938
        %v955 = vmul.f32 %v295, %v942
        %v956 = vmul.f32 %v297, %v946
        %v957 = vmul.f32 %v299, %v950
        %964 = vrot.lane.b32.xlu0 %v952, 111
        %v965 = vpop.permute.xlu0 %964
        %966 = vrot.lane.b32.xlu0 %v953, 111
        %v967 = vpop.permute.xlu0 %966
        %968 = vrot.lane.b32.xlu0 %v954, 111
        %v969 = vpop.permute.xlu0 %968
        %970 = vrot.lane.b32.xlu0 %v955, 111
        %v971 = vpop.permute.xlu0 %970
        %972 = vrot.lane.b32.xlu0 %v956, 111
        %v973 = vpop.permute.xlu0 %972
        %974 = vrot.lane.b32.xlu0 %v957, 111
        %v975 = vpop.permute.xlu0 %974
        %v982 = vadd.f32 %v916, %v965
        %v983 = vadd.f32 %v917, %v965
        %v984 = vadd.f32 %v918, %v967
        %v985 = vadd.f32 %v919, %v967
        %v986 = vadd.f32 %v920, %v969
        %v987 = vadd.f32 %v921, %v969
        %v988 = vadd.f32 %v922, %v971
        %v989 = vadd.f32 %v923, %v971
        %v990 = vadd.f32 %v924, %v973
        %v991 = vadd.f32 %v925, %v973
        %v992 = vadd.f32 %v926, %v975
        %v993 = vadd.f32 %v927, %v975
        %994 = vset.pattern.permute.xlu0 8
        %995 = vperm.xlu0 %994, %v280
        %v996 = vpop.permute.xlu0 %995
        %998 = vset.pattern.permute.xlu0 8
        %999 = vperm.xlu0 %998, %v281
        %v1000 = vpop.permute.xlu0 %999
        %1002 = vset.pattern.permute.xlu0 8
        %1003 = vperm.xlu0 %1002, %v282
        %v1004 = vpop.permute.xlu0 %1003
        %1006 = vset.pattern.permute.xlu0 8
        %1007 = vperm.xlu0 %1006, %v283
        %v1008 = vpop.permute.xlu0 %1007
        %1010 = vset.pattern.permute.xlu0 8
        %1011 = vperm.xlu0 %1010, %v284
        %v1012 = vpop.permute.xlu0 %1011
        %1014 = vset.pattern.permute.xlu0 8
        %1015 = vperm.xlu0 %1014, %v285
        %v1016 = vpop.permute.xlu0 %1015
        %v1018 = vmul.f32 %v289, %v996
        %v1019 = vmul.f32 %v291, %v1000
        %v1020 = vmul.f32 %v293, %v1004
        %v1021 = vmul.f32 %v295, %v1008
        %v1022 = vmul.f32 %v297, %v1012
        %v1023 = vmul.f32 %v299, %v1016
        %1024 = vrot.lane.b32.xlu0 %v510, 9
        %v1025 = vpop.permute.xlu0 %1024
        %v1027 = vmul.f32 %v1018, %v1025
        %v1028 = vmul.f32 %v1019, %v1025
        %v1029 = vmul.f32 %v1020, %v1025
        %v1030 = vmul.f32 %v1021, %v1025
        %v1031 = vmul.f32 %v1022, %v1025
        %v1032 = vmul.f32 %v1023, %v1025
        %1039 = vrot.lane.b32.xlu0 %v1027, 110
        %v1040 = vpop.permute.xlu0 %1039
        %1041 = vrot.lane.b32.xlu0 %v1028, 110
        %v1042 = vpop.permute.xlu0 %1041
        %1043 = vrot.lane.b32.xlu0 %v1029, 110
        %v1044 = vpop.permute.xlu0 %1043
        %1045 = vrot.lane.b32.xlu0 %v1030, 110
        %v1046 = vpop.permute.xlu0 %1045
        %1047 = vrot.lane.b32.xlu0 %v1031, 110
        %v1048 = vpop.permute.xlu0 %1047
        %1049 = vrot.lane.b32.xlu0 %v1032, 110
        %v1050 = vpop.permute.xlu0 %1049
        %v1057 = vadd.f32 %v982, %v1040
        %v1058 = vadd.f32 %v983, %v1040
        %v1059 = vadd.f32 %v984, %v1042
        %v1060 = vadd.f32 %v985, %v1042
        %v1061 = vadd.f32 %v986, %v1044
        %v1062 = vadd.f32 %v987, %v1044
        %v1063 = vadd.f32 %v988, %v1046
        %v1064 = vadd.f32 %v989, %v1046
        %v1065 = vadd.f32 %v990, %v1048
        %v1066 = vadd.f32 %v991, %v1048
        %v1067 = vadd.f32 %v992, %v1050
        %v1068 = vadd.f32 %v993, %v1050
        %1081 = vrot.lane.b32.xlu0 %v1057, 9
        %v1082 = vpop.permute.xlu0 %1081
        %1083 = vrot.lane.b32.xlu0 %v1058, 9
        %v1084 = vpop.permute.xlu0 %1083
        %1085 = vrot.lane.b32.xlu0 %v1059, 9
        %v1086 = vpop.permute.xlu0 %1085
        %1087 = vrot.lane.b32.xlu0 %v1060, 9
        %v1088 = vpop.permute.xlu0 %1087
        %1089 = vrot.lane.b32.xlu0 %v1061, 9
        %v1090 = vpop.permute.xlu0 %1089
        %1091 = vrot.lane.b32.xlu0 %v1062, 9
        %v1092 = vpop.permute.xlu0 %1091
        %1093 = vrot.lane.b32.xlu0 %v1063, 9
        %v1094 = vpop.permute.xlu0 %1093
        %1095 = vrot.lane.b32.xlu0 %v1064, 9
        %v1096 = vpop.permute.xlu0 %1095
        %1097 = vrot.lane.b32.xlu0 %v1065, 9
        %v1098 = vpop.permute.xlu0 %1097
        %1099 = vrot.lane.b32.xlu0 %v1066, 9
        %v1100 = vpop.permute.xlu0 %1099
        %1101 = vrot.lane.b32.xlu0 %v1067, 9
        %v1102 = vpop.permute.xlu0 %1101
        %1103 = vrot.lane.b32.xlu0 %v1068, 9
        %v1104 = vpop.permute.xlu0 %1103
        %vm1105 = vcmask 72704
        %v1106 = vsel %vm1105, %v1082, %v1084
        %v1107 = vsel %vm1105, %v1086, %v1088
        %v1108 = vsel %vm1105, %v1090, %v1092
        %v1109 = vsel %vm1105, %v1094, %v1096
        %v1110 = vsel %vm1105, %v1098, %v1100
        %v1111 = vsel %vm1105, %v1102, %v1104
        %1118 = vst.msk [vmem:[%s190] sm:$0xff] %vm273, %v1106
        %1119 = vst.msk [vmem:[%s190 + $0x8] sm:$0xff] %vm273, %v1107
        %1120 = vst.msk [vmem:[%s190 + $0x10] sm:$0xff] %vm273, %v1108
        %1121 = vst.msk [vmem:[%s190 + $0x18] sm:$0xff] %vm273, %v1109
        %1122 = vst.msk [vmem:[%s190 + $0x20] sm:$0xff] %vm273, %v1110
        %1123 = vst.msk [vmem:[%s190 + $0x28] sm:$0xff] %vm273, %v1111
        %s1124 = sand.u32 %s115, 1
        %s1125 = scalar_lea.sflag [#allocation4], %s1124
        %s1126 = sand.u32 %s115, 1
        %s1127 = smul.addr %s1126, 48
        %s1128 = scalar_lea.vmem [#allocation3], %s1127
        // Predicated region
        $region37: #{tpu_custom_call.1} parent=35 // pred_check
          %p1129 = pneg %p125
        $region38: #{tpu_custom_call.1} parent=35 // pred_check_branch
          %1131 = sbr.rel (%p1129) target = $region40
        $region39: #{tpu_custom_call.1} parent=35 // pred_region
          %1133 = vsyncadd %s1125, 0
          %s1134 = smul.addr %s18, 6
          %s1135 = smul.addr %s1134, 8
          %s1136 = scalar_lea.hbm %s4, %s1135
          %s1137 = sshll.u32 %s1128, 4
          %s1138 = int_to_ptr.vmem [resolvable:$true] %s1137
          %s1139 = sshll.u32 %s1136, 4
          %s1140 = int_to_ptr.hbm [resolvable:$true] %s1139
          %1145 = dma.vmem_to_hbm [thread:$0]  %s1138, 768, %s1140, %s1125, 128, 128, 8
        $region40: #{tpu_custom_call.1} parent=35 // pred_fallthru
          _
      $region36: #{tpu_custom_call.1} parent=5 // pred_fallthru
        _
      %p1146 = scmp.le.s32.totalorder 2, %s13
      // Predicated region
      $region41: #{tpu_custom_call.1} parent=5 // pred_check
        %p1147 = pneg %p1146
      $region42: #{tpu_custom_call.1} parent=5 // pred_check_branch
        %1149 = sbr.rel (%p1147) target = $region44
      $region43: #{tpu_custom_call.1} parent=5 // pred_region
        %s1150 = ssub.s32 %s13, 2
        // Predicated region
        $region45: #{tpu_custom_call.1} parent=43 // pred_check
          %p1151 = pneg %p131
        $region46: #{tpu_custom_call.1} parent=43 // pred_check_branch
          %1153 = sbr.rel (%p1151) target = $region48
        $region47: #{tpu_custom_call.1} parent=43 // pred_region
          %s1154 = sand.u32 %s116, 1
          %s1155 = scalar_lea.sflag [#allocation4], %s1154
          %s1156 = sand.u32 %s116, 1
          %s1157 = smul.addr %s1156, 48
          %s1158 = scalar_lea.vmem [#allocation3], %s1157
          %1160 = dma.done %s1155, 768
        $region48: #{tpu_custom_call.1} parent=43 // pred_fallthru
          _
      $region44: #{tpu_custom_call.1} parent=5 // pred_fallthru
        _
    $region6: #{tpu_custom_call.1} parent=1 // loop_footer
      %s17 = sadd.s32 1, %s13
    $region7: #{tpu_custom_call.1} parent=1 // loop_footer_branch
      %12 = sbr.rel target = $region3
    $region8: #{tpu_custom_call.1} parent=1 // loop_exit
      _
    %1161 = vsyncpa [#allocation4], 1
    %s1162 = scalar_lea.sflag [#allocation4], 1
    %1163 = vsyncpa %s1162, 1

</llo_original>
